<compile_context>
chip_gen: v7x
topology: tpu7x:2x2x1
jax: 0.10.0
libtpu: 0.0.40
codegen_flags: <defaults>
</compile_context>

<pallas_src>
import jax
import jax.numpy as jnp
from jax.experimental import pallas as pl
from jax.experimental.pallas import tpu as pltpu


def _make_linear_kernel(compute_dtype, fuse_gelu):
    def kernel(x_ref, w_ref, b_ref, o_ref):
        # x_ref: (TM, H) input dtype  -> cast on the VPU (free under the MXU)
        # w_ref: (H, TN) compute dtype (resident / streamed)
        # b_ref: (1, TN) f32          o_ref: (TM, TN) out dtype
        x = x_ref[...].astype(compute_dtype)
        acc = jnp.dot(x, w_ref[...], preferred_element_type=jnp.float32)
        acc = acc + b_ref[...]                      # bias add in f32
        if fuse_gelu:                               # optional fused epilogue
            acc = jax.nn.gelu(acc, approximate=True)
        o_ref[...] = acc.astype(o_ref.dtype)
    return kernel


def local_wrapper_forward(x, weight_t, bias, *, tm=512, tn=None,
                          use_bf16=True, out_dtype=None, fuse_gelu=False):
    """Equivalent of LocalWrapper.forward with local_net = Linear(hidden, hidden).

    x:         [batch, seq, hidden]   (any float dtype; read once from HBM)
    weight_t:  [hidden, hidden]       (PyTorch weight transposed: in x out)
    bias:      [hidden]
    tm:        row-tile size (auto-shrunk for megacore / small M)
    tn:        output-column tile (default: full H for H<2048, else 1024)
    use_bf16:  feed the MXU bf16 operands with f32 accumulation (BERT recipe)
    out_dtype: output dtype (default bf16 when use_bf16, else x.dtype)
    fuse_gelu: fuse a GELU epilogue into the kernel (default off = pure Linear)

    Note: production BERT hiddens (768/1024/4096) are multiples of 128, which
    keeps the output stores lane-dense (unmasked vst).  Non-multiples still
    work (toy case below) but fall back to masked partial stores.
    """
    B, S, H = x.shape
    M = B * S

    compute_dtype = jnp.bfloat16 if use_bf16 else jnp.dtype(x.dtype)
    if out_dtype is None:
        out_dtype = jnp.bfloat16 if use_bf16 else x.dtype
    out_dtype = jnp.dtype(out_dtype)

    # --- M tiling (megacore-aware, no wrapper-side padding) ------------------
    row_align = 16 if use_bf16 else 8              # sublane packing
    m_aligned = pl.cdiv(M, row_align) * row_align
    tm = min((max(tm, row_align) // row_align) * row_align, m_aligned)
    # Prefer >=2 M-steps so both v7x TensorCores get work (neutral elsewhere).
    while tm > row_align and pl.cdiv(M, tm) < 2:
        tm = max(row_align, ((tm // 2) // row_align) * row_align)
    grid_m = pl.cdiv(M, tm)

    # --- N tiling: bound the resident weight for large H (v7x 64 MiB/TC) -----
    if tn is None:
        tn = H if H < 2048 else 1024               # 1024 = multiple of 256 (MXU)
    tn = min(tn, H)
    grid_n = pl.cdiv(H, tn)

    x2d = x.reshape(M, H)                          # no cast, no pad: read f32 once
    wc = weight_t.astype(compute_dtype)            # one-time HxH cast (cheap vs MxH)
    b2d = bias.reshape(1, H).astype(jnp.float32)

    # Weight spec: fully resident & single-buffered when not N-tiled,
    # column-streamed (double-buffered) otherwise.
    if tn == H:
        w_spec = pl.BlockSpec(memory_space=pltpu.MemorySpace.VMEM)
        weight_buffers = 1
    else:
        w_spec = pl.BlockSpec((H, tn), lambda i, j: (0, j))
        weight_buffers = 2

    in_item = jnp.dtype(x.dtype).itemsize
    w_item = jnp.dtype(compute_dtype).itemsize
    out_item = out_dtype.itemsize

    # Explicit scoped-VMEM budget (defaults are 16/32 MiB, not physical).
    vmem_needed = (2 * tm * H * in_item            # x double buffer
                   + weight_buffers * H * tn * w_item
                   + 2 * tn * 4                    # bias
                   + 2 * tm * tn * out_item)       # out double buffer
    vmem_limit = int(min(max(2 * vmem_needed + (4 << 20), 16 << 20), 64 << 20))

    cost = pl.CostEstimate(
        flops=int(2 * M * H * H),
        transcendentals=0,
        bytes_accessed=int(M * H * in_item + H * H * w_item + H * 4
                           + M * H * out_item),
    )

    out2d = pl.pallas_call(
        _make_linear_kernel(compute_dtype, fuse_gelu),
        out_shape=jax.ShapeDtypeStruct((M, H), out_dtype),
        grid_spec=pltpu.PrefetchScalarGridSpec(
            num_scalar_prefetch=0,
            grid=(grid_m, grid_n),
            in_specs=[
                pl.BlockSpec((tm, H), lambda i, j: (i, 0)),   # x: tiled over M
                w_spec,                                       # weight
                pl.BlockSpec((1, tn), lambda i, j: (0, j)),   # bias
            ],
            out_specs=pl.BlockSpec((tm, tn), lambda i, j: (i, j)),  # lane-dense
        ),
        compiler_params=pltpu.CompilerParams(
            dimension_semantics=("parallel", "arbitrary"),  # M sharded on v7x
            vmem_limit_bytes=vmem_limit,
        ),
        cost_estimate=cost,
    )(x2d, wc, b2d)

    return out2d.reshape(B, S, H)


# ------------------------------ references / test ----------------------------

def _reference_f32(x, weight_t, bias):
    y = x.reshape(-1, x.shape[-1]).astype(jnp.float32) @ weight_t.astype(jnp.float32)
    return (y + bias).reshape(x.shape)


def _reference_mixed(x, weight_t, bias, out_dtype):
    # Matches the kernel's bf16-in / f32-accumulate / out_dtype-out recipe.
    xb = x.reshape(-1, x.shape[-1]).astype(jnp.bfloat16)
    wb = weight_t.astype(jnp.bfloat16)
    y = jnp.dot(xb, wb, preferred_element_type=jnp.float32) + bias
    return y.astype(out_dtype).reshape(x.shape)


def _run_case(key, B, S, H, tm):
    kx, kw, kb = jax.random.split(key, 3)
    x = jax.random.normal(kx, (B, S, H), dtype=jnp.float32)
    weight_t = jax.random.normal(kw, (H, H), dtype=jnp.float32) * (1.0 / jnp.sqrt(H))
    bias = jax.random.normal(kb, (H,), dtype=jnp.float32) * 0.01

    y = local_wrapper_forward(x, weight_t, bias, tm=tm, use_bf16=True)
    y = jax.block_until_ready(y)
    assert y.shape == (B, S, H)
    assert y.dtype == jnp.dtype(jnp.bfloat16)

    yf = y.astype(jnp.float32)
    y_mixed = _reference_mixed(x, weight_t, bias, jnp.bfloat16).astype(jnp.float32)
    assert jnp.allclose(yf, y_mixed, atol=2e-2, rtol=2e-2), "mismatch vs mixed ref"
    y_f32 = _reference_f32(x, weight_t, bias)
    assert jnp.allclose(yf, y_f32, atol=6e-2, rtol=6e-2), "mismatch vs f32 ref"


if __name__ == "__main__":
    key = jax.random.PRNGKey(0)
    k1, k2, k3 = jax.random.split(key, 3)

    # Toy shapes matching the module's config (single tile, H == full dim).
    _run_case(k1, B=2, S=8, H=32, tm=512)
    # Multi M-step grid with lane-dense H (H multiple of 128).
    _run_case(k2, B=2, S=256, H=256, tm=128)
    # Ragged last M tile (M=400, tm=128): exercises the no-pad partial-block path.
    _run_case(k3, B=2, S=200, H=256, tm=128)

    print("KERNEL_OK")
</pallas_src>

<mosaic_0001>
module attributes {stable_mosaic.version = 11 : i64} {
  func.func @kernel(%arg0: i32, %arg1: i32, %arg2: memref<16x32xf32, #tpu.memory_space<vmem>>, %arg3: memref<32x32xbf16, #tpu.memory_space<vmem>>, %arg4: memref<1x32xf32, #tpu.memory_space<vmem>>, %arg5: memref<16x32xbf16, #tpu.memory_space<vmem>>) attributes {dimension_semantics = [#tpu.dimension_semantics<parallel>, #tpu.dimension_semantics<arbitrary>], iteration_bounds = array<i64: 1, 1>, scalar_prefetch = 0 : i64, scratch_operands = 0 : i64, tpu.core_type = #tpu.core_type<tc>, window_params = [{transform_indices = @transform_0, window_bounds = array<i64: 16, 32>}, {pipeline_mode = #tpu.pipeline_mode<synchronous>, transform_indices = @transform_1, window_bounds = array<i64: 32, 32>}, {transform_indices = @transform_2, window_bounds = array<i64: 1, 32>}, {transform_indices = @transform_3, window_bounds = array<i64: 16, 32>}]} {
    %c0 = arith.constant 0 : index
    %c0_0 = arith.constant 0 : index
    %0 = vector.load %arg2[%c0, %c0_0] : memref<16x32xf32, #tpu.memory_space<vmem>>, vector<16x32xf32>
    %1 = arith.truncf %0 : vector<16x32xf32> to vector<16x32xbf16>
    %c0_1 = arith.constant 0 : index
    %c0_2 = arith.constant 0 : index
    %2 = vector.load %arg3[%c0_1, %c0_2] : memref<32x32xbf16, #tpu.memory_space<vmem>>, vector<32x32xbf16>
    %cst = arith.constant dense<0.000000e+00> : vector<16x32xf32>
    %3 = tpu.matmul %1, %2, %cst {dimension_numbers = #tpu.dot_dimension_numbers<[1], [0], [0], [1], [0, 0, 1, 1], [], []>} : vector<16x32xbf16>, vector<32x32xbf16>, vector<16x32xf32> -> vector<16x32xf32>
    %c0_3 = arith.constant 0 : index
    %c0_4 = arith.constant 0 : index
    %4 = vector.load %arg4[%c0_3, %c0_4] : memref<1x32xf32, #tpu.memory_space<vmem>>, vector<1x32xf32>
    %5 = vector.broadcast %4 : vector<1x32xf32> to vector<16x32xf32>
    %6 = arith.addf %3, %5 : vector<16x32xf32>
    %7 = arith.truncf %6 : vector<16x32xf32> to vector<16x32xbf16>
    %c0_5 = arith.constant 0 : index
    %c0_6 = arith.constant 0 : index
    %8 = vector.load %arg5[%c0_5, %c0_6] : memref<16x32xbf16, #tpu.memory_space<vmem>>, vector<16x32xbf16>
    tpu.vector_store %arg5[%c0_5, %c0_6], %7 {strides = array<i32>} : memref<16x32xbf16, #tpu.memory_space<vmem>>, vector<16x32xbf16>,
    return
  }
  func.func @transform_0(%arg0: i32, %arg1: i32) -> (i32, i32) {
    %c0_i32 = arith.constant 0 : i32
    %c0_i32_0 = arith.constant 0 : i32
    return %arg0, %c0_i32 : i32, i32
  }
  func.func @transform_1(%arg0: i32, %arg1: i32) -> (i32, i32) {
    %c0_i32 = arith.constant 0 : i32
    %c0_i32_0 = arith.constant 0 : i32
    %c0_i32_1 = arith.constant 0 : i32
    return %c0_i32, %c0_i32_0 : i32, i32
  }
  func.func @transform_2(%arg0: i32, %arg1: i32) -> (i32, i32) {
    %c0_i32 = arith.constant 0 : i32
    %c0_i32_0 = arith.constant 0 : i32
    return %c0_i32, %arg1 : i32, i32
  }
  func.func @transform_3(%arg0: i32, %arg1: i32) -> (i32, i32) {
    %c0_i32 = arith.constant 0 : i32
    return %arg0, %arg1 : i32, i32
  }
}

</mosaic_0001>

<llo_original>
// kernel: tpu_custom_call.1
$region0: #{tpu_custom_call.1}
  #allocation0 [shape = 'u32[]', space=smem, size = 0x4, offset = 0x4, fixed_abs, tag = 'smem constant byte address 0x4 - core index']
  #allocation1 [shape = 'u32[144,128]{1,0:T(1,128)}', space=vmem, size = 0x12000, scoped, tag = 'internal scratch']
  %s0 = inlined_call_operand.hbm [shape: f32[16,32], index: 0, kind: input, shape index: {}]
  %s1 = inlined_call_operand.hbm [shape: bf16[32,32], index: 1, kind: input, shape index: {}]
  %s2 = inlined_call_operand.vmem [shape: f32[1,32], index: 2, kind: input, shape index: {}]
  %s3 = inlined_call_operand.hbm [shape: bf16[16,32], index: 3, kind: output, shape index: {}]
  %s4 = sld [smem:[#allocation0]]
  $region30: #{tpu_custom_call.1} parent=0
    _
  %s6 = ssub.s32 1, %s4
  %s7 = scalar_select 0, %s6, %s4
  $region1: #{tpu_custom_call.1} parent=0
    #allocation2 [shape = 'u8[8192]{0}', space=vmem, size = 0x2000, scoped, tag = 'input window, operand 0, single buffered']
    #allocation3 [shape = 's32[1]{0}', space=sflag, size = 0x4, scoped, tag = 'scoped memory for tpu_custom_call.1']
    #allocation4 [shape = 's32[1]{0}', space=sflag, size = 0x4, scoped, tag = 'scoped memory for tpu_custom_call.1']
    #allocation5 [shape = 'u8[8192]{0}', space=vmem, size = 0x2000, scoped, tag = 'input window, operand 1, single buffered']
    #allocation6 [shape = 's32[1]{0}', space=sflag, size = 0x4, scoped, tag = 'scoped memory for tpu_custom_call.1']
    #allocation7 [shape = 'u8[4096]{0}', space=vmem, size = 0x1000, scoped, tag = 'output window, operand 0, single buffered']
    %8 = vsyncpa [#allocation3], 0
    %9 = vsyncpa [#allocation6], 0
    %10 = vsyncpa [#allocation4], 0
    // Predicated region
    $region2: #{tpu_custom_call.1} parent=1 // pred_check
      _
    $region3: #{tpu_custom_call.1} parent=1 // pred_check_branch
      %12 = sbr.rel (0) target = $region5
    $region4: #{tpu_custom_call.1} parent=1 // pred_region
      %s14 = ssub.s32 256, 256
      %15 = vsyncadd [#allocation3], %s14
      %s16 = sshll.u32 [#allocation2], 4
      %s17 = int_to_ptr.vmem [resolvable:$true] %s16
      %22 = dma.hbm_to_vmem [thread:$0]  %s0, 256, %s17, [#allocation3], 128, 128, 8
    $region5: #{tpu_custom_call.1} parent=1 // pred_fallthru
      _
    // Predicated region
    $region6: #{tpu_custom_call.1} parent=1 // pred_check
      _
    $region7: #{tpu_custom_call.1} parent=1 // pred_check_branch
      %24 = sbr.rel (0) target = $region9
    $region8: #{tpu_custom_call.1} parent=1 // pred_region
      %s26 = ssub.s32 256, 256
      %27 = vsyncadd [#allocation6], %s26
      %s28 = sshll.u32 [#allocation5], 4
      %s29 = int_to_ptr.vmem [resolvable:$true] %s28
      %34 = dma.hbm_to_vmem [thread:$0]  %s1, 256, %s29, [#allocation6], 64, 64, 4
    $region9: #{tpu_custom_call.1} parent=1 // pred_fallthru
      _
    // Predicated region
    $region10: #{tpu_custom_call.1} parent=1 // pred_check
      _
    $region11: #{tpu_custom_call.1} parent=1 // pred_check_branch
      %36 = sbr.rel (0) target = $region13
    $region12: #{tpu_custom_call.1} parent=1 // pred_region
      _
    $region13: #{tpu_custom_call.1} parent=1 // pred_fallthru
      _
    // Predicated region
    $region14: #{tpu_custom_call.1} parent=1 // pred_check
      _
    $region15: #{tpu_custom_call.1} parent=1 // pred_check_branch
      %38 = sbr.rel (0) target = $region17
    $region16: #{tpu_custom_call.1} parent=1 // pred_region
      %39 = dma.done [#allocation3], 256
    $region17: #{tpu_custom_call.1} parent=1 // pred_fallthru
      _
    // Predicated region
    $region18: #{tpu_custom_call.1} parent=1 // pred_check
      _
    $region19: #{tpu_custom_call.1} parent=1 // pred_check_branch
      %41 = sbr.rel (0) target = $region21
    $region20: #{tpu_custom_call.1} parent=1 // pred_region
      %42 = dma.done [#allocation6], 256
    $region21: #{tpu_custom_call.1} parent=1 // pred_fallthru
      _
    %v44 = vld [vmem:[#allocation2] sm:$0xff]
    %v45 = vld [vmem:[#allocation2 + $0x8] sm:$0xff]
    %v46 = vpack.c.bf16 %v45, %v44
    %v47 = vld [vmem:[#allocation5] sm:$0xf]
    %v48 = vld [vmem:[#allocation5 + $0x4] sm:$0xf]
    %v49 = vld [vmem:[#allocation5 + $0x8] sm:$0xf]
    %v50 = vld [vmem:[#allocation5 + $0xc] sm:$0xf]
    %v51 = vld [vmem:[%s2] sm:$0x1]
    %v53 = vlaneseq
    %v54 = vshrl.u32 %v53, 7
    %v55 = vsub.s32 0, %v54
    %v56 = vrot.slane %v51, %v55
    %v62 = vunpack.c.l.b16 %v47
    %v63 = vunpack.c.l.b16 %v48
    %v64 = vunpack.c.l.b16 %v49
    %v65 = vunpack.c.l.b16 %v50
    %v66 = vpack.c.b16 %v63, %v62
    %v67 = vpack.c.b16 %v65, %v64
    %vm70 = vcmask 261120
    %v72 = vsel %vm70, %v46, 0
    %74 = vmatprep.subr.bf16.mxu0 0
    %75 = vmatpush1.bf16.msra.mxu0 %v66
    %76 = vmatprep.subr.bf16.mxu0 0
    %77 = vmatpush1.bf16.msra.mxu0 %v67
    %78 = vmatprep.subr.bf16.mxu0 0
    %79 = vmatpush1.bf16.msra.mxu0 0
    %80 = vmatprep.subr.bf16.mxu0 0
    %81 = vmatpush1.bf16.msra.mxu0 0
    %82 = vmatprep.subr.bf16.mxu0 0
    %83 = vmatpush1.bf16.msra.mxu0 0
    %84 = vmatprep.subr.bf16.mxu0 0
    %85 = vmatpush1.bf16.msra.mxu0 0
    %86 = vmatprep.subr.bf16.mxu0 0
    %87 = vmatpush1.bf16.msra.mxu0 0
    %88 = vmatprep.subr.bf16.mxu0 0
    %89 = vmatpush1.bf16.msra.mxu0 0
    %90 = vmatprep.subr.bf16.mxu0 0
    %91 = vmatpush1.bf16.msra.mxu0 0
    %92 = vmatprep.subr.bf16.mxu0 0
    %93 = vmatpush1.bf16.msra.mxu0 0
    %94 = vmatprep.subr.bf16.mxu0 0
    %95 = vmatpush1.bf16.msra.mxu0 0
    %96 = vmatprep.subr.bf16.mxu0 0
    %97 = vmatpush1.bf16.msra.mxu0 0
    %98 = vmatprep.subr.bf16.mxu0 0
    %99 = vmatpush1.bf16.msra.mxu0 0
    %100 = vmatprep.subr.bf16.mxu0 0
    %101 = vmatpush1.bf16.msra.mxu0 0
    %102 = vmatprep.subr.bf16.mxu0 0
    %103 = vmatpush1.bf16.msra.mxu0 0
    %104 = vmatprep.subr.bf16.mxu0 0
    %105 = vmatpush1.bf16.msra.mxu0 0
    %106 = vmatprep.mubr.bf16.mxu0 0
    %107 = vmatmul.mubr.bf16.gmra.mrb[0].mxu0 %v72
    %v108 = vpop.f32.mrb[0].mxu0
    %v109 = vadd.f32 %v56, %v108
    %v110 = vpop.f32.mrb[0].mxu0
    %v111 = vpop.f32.mrb[0].mxu0
    %v112 = vadd.f32 %v56, %v111
    %v113 = vpop.f32.mrb[0].mxu0
    %114 = vdwg.mxu0
    %v115 = vpack.c.bf16 %v112, %v109
    %v117 = vunpack.c.l.b16 %v115
    %v118 = vunpack.c.h.b16 %v115
    %v119 = vpack.c.b16 %v117, %v117
    %v120 = vpack.c.b16 %v118, %v118
    %vm123 = vcmask 257024
    %124 = vst.msk [vmem:[#allocation7] sm:$0xf] %vm123, %v119
    %125 = vst.msk [vmem:[#allocation7 + $0x4] sm:$0xf] %vm123, %v120
    // Predicated region
    $region22: #{tpu_custom_call.1} parent=1 // pred_check
      _
    $region23: #{tpu_custom_call.1} parent=1 // pred_check_branch
      %127 = sbr.rel (0) target = $region25
    $region24: #{tpu_custom_call.1} parent=1 // pred_region
      %s129 = ssub.s32 128, 128
      %130 = vsyncadd [#allocation4], %s129
      %s131 = sshll.u32 [#allocation7], 4
      %s132 = int_to_ptr.vmem [resolvable:$true] %s131
      %137 = dma.vmem_to_hbm [thread:$0]  %s132, 128, %s3, [#allocation4], 64, 64, 4
    $region25: #{tpu_custom_call.1} parent=1 // pred_fallthru
      _
    // Predicated region
    $region26: #{tpu_custom_call.1} parent=1 // pred_check
      _
    $region27: #{tpu_custom_call.1} parent=1 // pred_check_branch
      %139 = sbr.rel (0) target = $region29
    $region28: #{tpu_custom_call.1} parent=1 // pred_region
      %140 = dma.done [#allocation4], 128
    $region29: #{tpu_custom_call.1} parent=1 // pred_fallthru
      _
    %141 = vsyncpa [#allocation3], 1
    %142 = vsyncpa [#allocation6], 1
    %143 = vsyncpa [#allocation4], 1

</llo_original>
